<compile_context>
chip_gen: v7x
topology: tpu7x:2x2x1
jax: 0.10.0
libtpu: 0.0.40
codegen_flags: <defaults>
</compile_context>

<pallas_src>
import functools

import jax
import jax.numpy as jnp
import numpy as np
from jax.experimental import pallas as pl
from jax.experimental.pallas import tpu as pltpu


def _plan_time_tiles(T, per_row_bytes, max_rows=1024):
    """Pick the time tile TT and padded length T_pad (multiple of TT).

    TT is either the full T (always a legal full-dim block) or a multiple of
    128 so the lane-dense output stores stay unmasked and the (8,128)
    BlockSpec rule holds.  The cap is derived from the per-core VMEM capacity
    so the same heuristic is safe on v5e/v6e (128 MiB) and v7x (64 MiB).
    """
    try:
        info = pltpu.get_tpu_info()
        vmem = int(getattr(info, "vmem_capacity_bytes", 64 * 1024 * 1024))
    except Exception:                               # API drift / not on TPU
        vmem = 64 * 1024 * 1024
    budget = vmem // 8                              # stay far below the scoped default
    cap = max(128, min(max_rows, budget // max(per_row_bytes, 1)))
    cap -= cap % 128
    if T <= cap:
        return T, T
    for tt in range(cap, 127, -128):
        if T % tt == 0:
            return tt, T
    tt = cap
    return tt, pl.cdiv(T, tt) * tt


# ---------------------------------------------------------------------------
# Pallas kernel: one (band, batch, time-tile) per grid step.
#   q_ref   : (TT, E)        time-tile of one band / one batch element
#   w1t_ref : (M, E)         hidden Linear, LN-affine folded in, pre-transposed
#   b1_ref  : (M, 1)         folded hidden bias (f32)
#   w2t_ref : (2*Oh, M)      fused GLU weight (value rows then gate rows),
#                            columns pre-permuted to (channel, reim, bin) order
#   b2_ref  : (2*Oh, 1)      fused GLU bias (f32)
#   out_ref : (C, 2*W, TT)   post-GLU mask, time on the lane axis
# ---------------------------------------------------------------------------
def _norm_mlp_kernel(q_ref, w1t_ref, b1_ref, w2t_ref, b2_ref, out_ref, *,
                     compute_dtype, in_channel, bandwidth):
    oh = in_channel * bandwidth * 2
    x = q_ref[...].astype(jnp.float32)                        # (TT, E)

    # LayerNorm statistics (eps = 1e-5, torch default); affine is folded into
    # w1/b1 on the host so no gamma/beta pass is needed here.
    mean = jnp.mean(x, axis=-1, keepdims=True)
    xc = x - mean
    var = jnp.mean(xc * xc, axis=-1, keepdims=True)
    xn = xc * jax.lax.rsqrt(var + 1e-5)                       # (TT, E) f32

    # Hidden Linear (E -> M) emitted TRANSPOSED via A @ B^T contraction so the
    # time tile lands on the lane axis for the bias add / tanh / cast.
    h_t = jax.lax.dot_general(
        w1t_ref[...], xn.astype(compute_dtype),
        (((1,), (1,)), ((), ())),
        preferred_element_type=jnp.float32)                   # (M, TT)
    h_t = jnp.tanh(h_t + b1_ref[...])                         # f32 bias + tanh

    # Output Linear + GLU as ONE fused matmul: (2*Oh, M) @ (M, TT) -> (2*Oh, TT)
    o = jnp.dot(w2t_ref[...], h_t.astype(compute_dtype),
                preferred_element_type=jnp.float32)
    o = o + b2_ref[...]                                       # (2*Oh, TT) f32
    a_t = o[:oh, :]
    g_t = o[oh:, :]
    y = a_t * jax.nn.sigmoid(g_t)                             # (Oh, TT), rows = (c, reim, bin)

    # Scatter per-channel row slabs into the consumer-layout block (C, 2W, TT).
    two_w = 2 * bandwidth
    for c in range(in_channel):
        out_ref[c, :, :] = y[c * two_w:(c + 1) * two_w, :].astype(out_ref.dtype)


def mask_estimation_forward(q, params, *, in_channel, bandwidth,
                            time_tile=None, compute_dtype=None):
    """q: (B, NB, T, E) -> masks: (B, in_channel, NB*bandwidth, T) complex64.

    params: dict with per-band stacked tensors
      gamma/beta: (NB, E), w1: (NB, E, M), b1: (NB, M),
      w2: (NB, M, O), b2: (NB, O)  with O = 2 * bandwidth * in_channel * 2.
    """
    B, NB, T, E = q.shape
    gamma, beta, w1, b1, w2, b2 = (params[k] for k in
                                   ("gamma", "beta", "w1", "b1", "w2", "b2"))
    M = w1.shape[-1]
    O = w2.shape[-1]
    Oh = O // 2                       # = bandwidth * in_channel * 2 (re/im)
    assert Oh == bandwidth * in_channel * 2, "complex_mask layout mismatch"
    # TODO(synk): non-uniform per-band bandwidths would need per-band Oh
    # (ragged output); this stacked-parameter kernel assumes uniform bandwidth.

    if compute_dtype is None:
        compute_dtype = jnp.bfloat16 if q.dtype == jnp.bfloat16 else jnp.float32

    f32 = jnp.float32

    # --- Host-side (tiny) weight prep -------------------------------------
    # Fold LayerNorm affine into the first Linear and pre-transpose it.
    w1f = gamma.astype(f32)[:, :, None] * w1.astype(f32)                  # (NB, E, M)
    b1f = jnp.einsum("ne,nem->nm", beta.astype(f32), w1.astype(f32)) \
        + b1.astype(f32)                                                  # (NB, M)
    w1f_t = jnp.transpose(w1f, (0, 2, 1)).astype(compute_dtype)           # (NB, M, E)
    b1f = b1f.reshape(NB, M, 1)

    # Fuse GLU halves into one weight; permute output columns so the kernel's
    # rows come out in (channel, reim, bin) order -> final layout needs no
    # post-kernel transpose.
    perm = np.arange(Oh).reshape(in_channel, bandwidth, 2)
    perm = perm.transpose(0, 2, 1).reshape(Oh)                            # (c,w,r) -> (c,r,w)
    w2_f = w2.astype(f32)
    w2a = w2_f[:, :, :Oh][:, :, perm]
    w2g = w2_f[:, :, Oh:][:, :, perm]
    w2f_t = jnp.transpose(jnp.concatenate([w2a, w2g], axis=-1),
                          (0, 2, 1)).astype(compute_dtype)                # (NB, 2*Oh, M)
    b2_f = b2.astype(f32)
    b2f = jnp.concatenate([b2_f[:, :Oh][:, perm], b2_f[:, Oh:][:, perm]],
                          axis=-1).reshape(NB, 2 * Oh, 1)

    # --- Time tiling (VMEM-budget aware, 128-aligned, pad if needed) ------
    per_row_bytes = (3 * 128 * q.dtype.itemsize       # q tile (E padded to 128 lanes)
                     + 128 * 4                        # f32 LN temps
                     + (M + 3 * Oh) * 4               # h_t / o / y (time on lanes)
                     + 2 * in_channel * 2 * 8 * 4)    # output tile (double-buffered)
    if time_tile is None:
        TT, T_pad = _plan_time_tiles(T, per_row_bytes)
    else:
        TT = time_tile
        T_pad = pl.cdiv(T, TT) * TT
    if T_pad != T:
        q = jnp.pad(q, ((0, 0), (0, 0), (0, T_pad - T), (0, 0)))

    grid = (NB, B, T_pad // TT)

    flops = 2 * NB * B * T_pad * (E * M + M * 2 * Oh)
    transcendentals = NB * B * T_pad * (M + Oh)
    bytes_accessed = int(
        q.size * q.dtype.itemsize
        + NB * B * 2 * Oh * T_pad * 4
        + sum(int(np.prod(p.shape)) * p.dtype.itemsize
              for p in (w1f_t, b1f, w2f_t, b2f)))

    kernel = functools.partial(_norm_mlp_kernel, compute_dtype=compute_dtype,
                               in_channel=in_channel, bandwidth=bandwidth)

    out = pl.pallas_call(
        kernel,
        out_shape=jax.ShapeDtypeStruct(
            (B, in_channel, NB, 2 * bandwidth, T_pad), jnp.float32),
        grid=grid,
        in_specs=[
            # q indexed in its original (B, NB, T, E) layout: no HBM transpose.
            pl.BlockSpec((None, None, TT, E), lambda nb, b, t: (b, nb, t, 0)),
            # Per-band params: index depends only on nb -> stay VMEM-resident
            # across all inner (batch, time) iterations.
            pl.BlockSpec((None, M, E), lambda nb, b, t: (nb, 0, 0)),
            pl.BlockSpec((None, M, 1), lambda nb, b, t: (nb, 0, 0)),
            pl.BlockSpec((None, 2 * Oh, M), lambda nb, b, t: (nb, 0, 0)),
            pl.BlockSpec((None, 2 * Oh, 1), lambda nb, b, t: (nb, 0, 0)),
        ],
        # Consumer-layout, lane-dense output: (C, 2W, TT) tiles, time on lanes.
        out_specs=pl.BlockSpec((None, in_channel, None, 2 * bandwidth, TT),
                               lambda nb, b, t: (b, 0, nb, 0, t)),
        compiler_params=pltpu.CompilerParams(
            dimension_semantics=("parallel", "parallel", "parallel")),
        cost_estimate=pl.CostEstimate(flops=flops,
                                      transcendentals=transcendentals,
                                      bytes_accessed=bytes_accessed),
    )(q, w1f_t, b1f, w2f_t, b2f)

    # Glue: ONLY complex() + free reshapes (no post-kernel transpose pass).
    out = out.reshape(B, in_channel, NB, 2, bandwidth, T_pad)
    mc = jax.lax.complex(out[:, :, :, 0], out[:, :, :, 1])    # (B, C, NB, W, T_pad)
    masks = mc.reshape(B, in_channel, NB * bandwidth, T_pad)  # concat over bands
    if T_pad != T:
        masks = masks[..., :T]
    return masks


# ---------------------------------------------------------------------------
# Pure-JAX reference (mirrors the PyTorch forward) for a sanity check.
# ---------------------------------------------------------------------------
def reference_forward(q, params, *, in_channel, bandwidth):
    B, NB, T, E = q.shape
    outs = []
    for b in range(NB):
        qb = q[:, b].astype(jnp.float32)                      # (B,T,E)
        mean = qb.mean(-1, keepdims=True)
        var = ((qb - mean) ** 2).mean(-1, keepdims=True)
        xn = (qb - mean) / jnp.sqrt(var + 1e-5)
        xn = xn * params["gamma"][b].astype(jnp.float32) \
            + params["beta"][b].astype(jnp.float32)
        h = jnp.tanh(xn @ params["w1"][b].astype(jnp.float32)
                     + params["b1"][b].astype(jnp.float32))
        o = h @ params["w2"][b].astype(jnp.float32) + params["b2"][b].astype(jnp.float32)
        a, g = jnp.split(o, 2, axis=-1)
        m = a * jax.nn.sigmoid(g)                             # (B,T,C*W*2)
        m = m.reshape(B, T, in_channel, bandwidth, 2)
        mc = jax.lax.complex(m[..., 0], m[..., 1])            # (B,T,C,W)
        mc = jnp.transpose(mc, (0, 2, 3, 1))                  # (B,C,W,T)
        outs.append(mc)
    return jnp.concatenate(outs, axis=2)


if __name__ == "__main__":
    # Small, module-consistent shapes.
    B, NB, T, E = 2, 4, 8, 32          # batch, n_bands, n_time, emb_dim
    M = 64                             # mlp_dim
    C = 2                              # in_channel
    W = 4                              # bandwidth per band (uniform, no gaps/overlap)
    REIM = 2                           # complex_mask=True
    O = W * C * REIM * 2               # output Linear width (pre-GLU)

    key = jax.random.PRNGKey(0)
    k_q, k_g, k_be, k_w1, k_b1, k_w2, k_b2 = jax.random.split(key, 7)

    q = jax.random.normal(k_q, (B, NB, T, E), dtype=jnp.float32)

    # Deterministic synthetic parameters (stacked over bands), non-trivial
    # gamma/beta to also validate the LayerNorm-affine fold.
    params = {
        "gamma": 1.0 + 0.1 * jax.random.normal(k_g, (NB, E), dtype=jnp.float32),
        "beta": 0.1 * jax.random.normal(k_be, (NB, E), dtype=jnp.float32),
        "w1": 0.05 * jax.random.normal(k_w1, (NB, E, M), dtype=jnp.float32),
        "b1": 0.05 * jax.random.normal(k_b1, (NB, M), dtype=jnp.float32),
        "w2": 0.05 * jax.random.normal(k_w2, (NB, M, O), dtype=jnp.float32),
        "b2": 0.05 * jax.random.normal(k_b2, (NB, O), dtype=jnp.float32),
    }

    ref = reference_forward(q, params, in_channel=C, bandwidth=W)

    # f32 path: check against the reference.
    fwd = jax.jit(functools.partial(mask_estimation_forward,
                                    in_channel=C, bandwidth=W))
    masks = fwd(q, params)
    jax.block_until_ready(masks)
    assert masks.shape == (B, C, NB * W, T)
    assert masks.dtype == jnp.complex64
    np.testing.assert_allclose(np.asarray(masks), np.asarray(ref),
                               rtol=1e-4, atol=1e-5)

    # Tiled + padded-time path (T not a multiple of the tile): exercises the
    # 128-aligned tiling, q padding and the trailing-slice glue.
    T2 = 200
    q2 = jax.random.normal(jax.random.PRNGKey(1), (B, NB, T2, E),
                           dtype=jnp.float32)
    ref2 = reference_forward(q2, params, in_channel=C, bandwidth=W)
    fwd2 = jax.jit(functools.partial(mask_estimation_forward,
                                     in_channel=C, bandwidth=W, time_tile=128))
    masks2 = fwd2(q2, params)
    jax.block_until_ready(masks2)
    assert masks2.shape == (B, C, NB * W, T2)
    np.testing.assert_allclose(np.asarray(masks2), np.asarray(ref2),
                               rtol=1e-4, atol=1e-5)

    # bf16-operand path (default whenever q arrives as bf16): halves q HBM
    # traffic and doubles MXU rate on v6e/v7x; LN / activations stay f32.
    q_bf = q.astype(jnp.bfloat16)
    params_bf = dict(params)
    params_bf["w1"] = params["w1"].astype(jnp.bfloat16)
    params_bf["w2"] = params["w2"].astype(jnp.bfloat16)
    fwd_bf = jax.jit(functools.partial(mask_estimation_forward,
                                       in_channel=C, bandwidth=W))
    masks_bf = fwd_bf(q_bf, params_bf)
    jax.block_until_ready(masks_bf)
    np.testing.assert_allclose(np.asarray(masks_bf), np.asarray(ref),
                               rtol=2e-2, atol=2e-2)

    print("KERNEL_OK")
</pallas_src>

<mosaic_0001>
module attributes {stable_mosaic.version = 11 : i64} {
  func.func @_norm_mlp_kernel(%arg0: i32, %arg1: i32, %arg2: i32, %arg3: memref<1x1x8x32xf32, #tpu.memory_space<vmem>>, %arg4: memref<1x64x32xf32, #tpu.memory_space<vmem>>, %arg5: memref<1x64x1xf32, #tpu.memory_space<vmem>>, %arg6: memref<1x32x64xf32, #tpu.memory_space<vmem>>, %arg7: memref<1x32x1xf32, #tpu.memory_space<vmem>>, %arg8: memref<1x2x1x8x8xf32, #tpu.memory_space<vmem>>) attributes {dimension_semantics = [#tpu.dimension_semantics<parallel>, #tpu.dimension_semantics<parallel>, #tpu.dimension_semantics<parallel>], iteration_bounds = array<i64: 4, 2, 1>, scalar_prefetch = 0 : i64, scratch_operands = 0 : i64, tpu.core_type = #tpu.core_type<tc>, window_params = [{transform_indices = @transform_0, window_bounds = array<i64: 1, 1, 8, 32>}, {transform_indices = @transform_1, window_bounds = array<i64: 1, 64, 32>}, {transform_indices = @transform_2, window_bounds = array<i64: 1, 64, 1>}, {transform_indices = @transform_3, window_bounds = array<i64: 1, 32, 64>}, {transform_indices = @transform_4, window_bounds = array<i64: 1, 32, 1>}, {transform_indices = @transform_5, window_bounds = array<i64: 1, 2, 1, 8, 8>}]} {
    %c0 = arith.constant 0 : index
    %c0_0 = arith.constant 0 : index
    %c0_1 = arith.constant 0 : index
    %c0_2 = arith.constant 0 : index
    %0 = vector.load %arg3[%c0, %c0_0, %c0_1, %c0_2] : memref<1x1x8x32xf32, #tpu.memory_space<vmem>>, vector<1x1x8x32xf32>
    %1 = vector.shape_cast %0 : vector<1x1x8x32xf32> to vector<8x32xf32>
    %cst = arith.constant dense<0.000000e+00> : vector<8xf32>
    %2 = vector.multi_reduction <add>, %1, %cst [1] : vector<8x32xf32> to vector<8xf32>
    %3 = vector.shape_cast %2 : vector<8xf32> to vector<8x1xf32>
    %cst_3 = arith.constant 3.200000e+01 : f32
    %4 = vector.broadcast %cst_3 : f32 to vector<8x1xf32>
    %5 = arith.divf %3, %4 : vector<8x1xf32>
    %6 = vector.broadcast %5 : vector<8x1xf32> to vector<8x32xf32>
    %7 = arith.subf %1, %6 : vector<8x32xf32>
    %8 = arith.mulf %7, %7 : vector<8x32xf32>
    %cst_4 = arith.constant dense<0.000000e+00> : vector<8xf32>
    %9 = vector.multi_reduction <add>, %8, %cst_4 [1] : vector<8x32xf32> to vector<8xf32>
    %10 = vector.shape_cast %9 : vector<8xf32> to vector<8x1xf32>
    %cst_5 = arith.constant 3.200000e+01 : f32
    %11 = vector.broadcast %cst_5 : f32 to vector<8x1xf32>
    %12 = arith.divf %10, %11 : vector<8x1xf32>
    %cst_6 = arith.constant 9.99999974E-6 : f32
    %13 = vector.broadcast %cst_6 : f32 to vector<8x1xf32>
    %14 = arith.addf %12, %13 : vector<8x1xf32>
    %15 = math.rsqrt %14 : vector<8x1xf32>
    %16 = vector.broadcast %15 : vector<8x1xf32> to vector<8x32xf32>
    %17 = arith.mulf %7, %16 : vector<8x32xf32>
    %c0_7 = arith.constant 0 : index
    %c0_8 = arith.constant 0 : index
    %c0_9 = arith.constant 0 : index
    %18 = vector.load %arg4[%c0_7, %c0_8, %c0_9] : memref<1x64x32xf32, #tpu.memory_space<vmem>>, vector<1x64x32xf32>
    %19 = vector.shape_cast %18 : vector<1x64x32xf32> to vector<64x32xf32>
    %cst_10 = arith.constant dense<0.000000e+00> : vector<64x8xf32>
    %20 = tpu.matmul %19, %17, %cst_10 {dimension_numbers = #tpu.dot_dimension_numbers<[1], [1], [0], [0], [0, 0, 1, 0], [], []>} : vector<64x32xf32>, vector<8x32xf32>, vector<64x8xf32> -> vector<64x8xf32>
    %c0_11 = arith.constant 0 : index
    %c0_12 = arith.constant 0 : index
    %c0_13 = arith.constant 0 : index
    %21 = vector.load %arg5[%c0_11, %c0_12, %c0_13] : memref<1x64x1xf32, #tpu.memory_space<vmem>>, vector<1x64x1xf32>
    %22 = vector.shape_cast %21 : vector<1x64x1xf32> to vector<64x1xf32>
    %23 = vector.broadcast %22 : vector<64x1xf32> to vector<64x8xf32>
    %24 = arith.addf %20, %23 : vector<64x8xf32>
    %25 = math.tanh %24 : vector<64x8xf32>
    %c0_14 = arith.constant 0 : index
    %c0_15 = arith.constant 0 : index
    %c0_16 = arith.constant 0 : index
    %26 = vector.load %arg6[%c0_14, %c0_15, %c0_16] : memref<1x32x64xf32, #tpu.memory_space<vmem>>, vector<1x32x64xf32>
    %27 = vector.shape_cast %26 : vector<1x32x64xf32> to vector<32x64xf32>
    %cst_17 = arith.constant dense<0.000000e+00> : vector<32x8xf32>
    %28 = tpu.matmul %27, %25, %cst_17 {dimension_numbers = #tpu.dot_dimension_numbers<[1], [0], [0], [1], [0, 0, 1, 1], [], []>} : vector<32x64xf32>, vector<64x8xf32>, vector<32x8xf32> -> vector<32x8xf32>
    %c0_18 = arith.constant 0 : index
    %c0_19 = arith.constant 0 : index
    %c0_20 = arith.constant 0 : index
    %29 = vector.load %arg7[%c0_18, %c0_19, %c0_20] : memref<1x32x1xf32, #tpu.memory_space<vmem>>, vector<1x32x1xf32>
    %30 = vector.shape_cast %29 : vector<1x32x1xf32> to vector<32x1xf32>
    %31 = vector.broadcast %30 : vector<32x1xf32> to vector<32x8xf32>
    %32 = arith.addf %28, %31 : vector<32x8xf32>
    %33 = vector.extract_strided_slice %32 {offsets = [0, 0], sizes = [16, 8], strides = [1, 1]} : vector<32x8xf32> to vector<16x8xf32>
    %34 = vector.extract_strided_slice %32 {offsets = [16, 0], sizes = [16, 8], strides = [1, 1]} : vector<32x8xf32> to vector<16x8xf32>
    %35 = arith.negf %34 : vector<16x8xf32>
    %36 = math.exp %35 : vector<16x8xf32>
    %cst_21 = arith.constant 1.000000e+00 : f32
    %37 = vector.broadcast %cst_21 : f32 to vector<16x8xf32>
    %38 = arith.addf %37, %36 : vector<16x8xf32>
    %39 = arith.divf %37, %38 : vector<16x8xf32>
    %40 = arith.mulf %33, %39 : vector<16x8xf32>
    %41 = vector.extract_strided_slice %40 {offsets = [0, 0], sizes = [8, 8], strides = [1, 1]} : vector<16x8xf32> to vector<8x8xf32>
    %c0_22 = arith.constant 0 : index
    %c0_23 = arith.constant 0 : index
    %c0_24 = arith.constant 0 : index
    %c0_25 = arith.constant 0 : index
    %c0_26 = arith.constant 0 : index
    %42 = vector.load %arg8[%c0_22, %c0_23, %c0_24, %c0_25, %c0_26] : memref<1x2x1x8x8xf32, #tpu.memory_space<vmem>>, vector<1x1x1x8x8xf32>
    %43 = vector.shape_cast %42 : vector<1x1x1x8x8xf32> to vector<8x8xf32>
    %44 = vector.shape_cast %41 : vector<8x8xf32> to vector<1x1x1x8x8xf32>
    tpu.vector_store %arg8[%c0_22, %c0_23, %c0_24, %c0_25, %c0_26], %44 {strides = array<i32>} : memref<1x2x1x8x8xf32, #tpu.memory_space<vmem>>, vector<1x1x1x8x8xf32>,
    %45 = vector.extract_strided_slice %40 {offsets = [8, 0], sizes = [8, 8], strides = [1, 1]} : vector<16x8xf32> to vector<8x8xf32>
    %c0_27 = arith.constant 0 : index
    %c1 = arith.constant 1 : index
    %c0_28 = arith.constant 0 : index
    %c0_29 = arith.constant 0 : index
    %c0_30 = arith.constant 0 : index
    %46 = vector.load %arg8[%c0_27, %c1, %c0_28, %c0_29, %c0_30] : memref<1x2x1x8x8xf32, #tpu.memory_space<vmem>>, vector<1x1x1x8x8xf32>
    %47 = vector.shape_cast %46 : vector<1x1x1x8x8xf32> to vector<8x8xf32>
    %48 = vector.shape_cast %45 : vector<8x8xf32> to vector<1x1x1x8x8xf32>
    tpu.vector_store %arg8[%c0_27, %c1, %c0_28, %c0_29, %c0_30], %48 {strides = array<i32>} : memref<1x2x1x8x8xf32, #tpu.memory_space<vmem>>, vector<1x1x1x8x8xf32>,
    return
  }
  func.func @transform_0(%arg0: i32, %arg1: i32, %arg2: i32) -> (i32, i32, i32, i32) {
    %c0_i32 = arith.constant 0 : i32
    %c0_i32_0 = arith.constant 0 : i32
    return %arg1, %arg0, %arg2, %c0_i32 : i32, i32, i32, i32
  }
  func.func @transform_1(%arg0: i32, %arg1: i32, %arg2: i32) -> (i32, i32, i32) {
    %c0_i32 = arith.constant 0 : i32
    %c0_i32_0 = arith.constant 0 : i32
    %c0_i32_1 = arith.constant 0 : i32
    return %arg0, %c0_i32, %c0_i32_0 : i32, i32, i32
  }
  func.func @transform_2(%arg0: i32, %arg1: i32, %arg2: i32) -> (i32, i32, i32) {
    %c0_i32 = arith.constant 0 : i32
    %c0_i32_0 = arith.constant 0 : i32
    %c0_i32_1 = arith.constant 0 : i32
    return %arg0, %c0_i32, %c0_i32_0 : i32, i32, i32
  }
  func.func @transform_3(%arg0: i32, %arg1: i32, %arg2: i32) -> (i32, i32, i32) {
    %c0_i32 = arith.constant 0 : i32
    %c0_i32_0 = arith.constant 0 : i32
    %c0_i32_1 = arith.constant 0 : i32
    return %arg0, %c0_i32, %c0_i32_0 : i32, i32, i32
  }
  func.func @transform_4(%arg0: i32, %arg1: i32, %arg2: i32) -> (i32, i32, i32) {
    %c0_i32 = arith.constant 0 : i32
    %c0_i32_0 = arith.constant 0 : i32
    %c0_i32_1 = arith.constant 0 : i32
    return %arg0, %c0_i32, %c0_i32_0 : i32, i32, i32
  }
  func.func @transform_5(%arg0: i32, %arg1: i32, %arg2: i32) -> (i32, i32, i32, i32, i32) {
    %c0_i32 = arith.constant 0 : i32
    %c0_i32_0 = arith.constant 0 : i32
    %c0_i32_1 = arith.constant 0 : i32
    return %arg1, %c0_i32, %arg0, %c0_i32_0, %arg2 : i32, i32, i32, i32, i32
  }
}

</mosaic_0001>

<llo_original>
// kernel: custom-call
$region0: #{custom-call}
  %s0 = inlined_call_operand.vmem [shape: f32[2,2,16,8], index: 0, kind: input, shape index: {}]
  %s1 = inlined_call_operand.vmem [shape: f32[2,2,16,8], index: 1, kind: input, shape index: {}]
  %s2 = inlined_call_operand.vmem [shape: c64[2,2,16,8], index: 2, kind: output, shape index: {}]
  %s4 = scalar_lea.vmem %s2, 64
  %v5 = vld [vmem:[%s0] sm:$0xff]
  %6 = vst [vmem:[%s2] sm:$0xff] %v5
  %s7 = scalar_lea.vmem %s2, 8
  %s8 = scalar_lea.vmem %s0, 8
  %v9 = vld [vmem:[%s8] sm:$0xff]
  %10 = vst [vmem:[%s7] sm:$0xff] %v9
  %s11 = scalar_lea.vmem %s2, 16
  %s12 = scalar_lea.vmem %s0, 16
  %v13 = vld [vmem:[%s12] sm:$0xff]
  %14 = vst [vmem:[%s11] sm:$0xff] %v13
  %s15 = scalar_lea.vmem %s2, 24
  %s16 = scalar_lea.vmem %s0, 24
  %v17 = vld [vmem:[%s16] sm:$0xff]
  %18 = vst [vmem:[%s15] sm:$0xff] %v17
  %s19 = scalar_lea.vmem %s2, 32
  %s20 = scalar_lea.vmem %s0, 32
  %v21 = vld [vmem:[%s20] sm:$0xff]
  %22 = vst [vmem:[%s19] sm:$0xff] %v21
  %s23 = scalar_lea.vmem %s2, 40
  %s24 = scalar_lea.vmem %s0, 40
  %v25 = vld [vmem:[%s24] sm:$0xff]
  %26 = vst [vmem:[%s23] sm:$0xff] %v25
  %s27 = scalar_lea.vmem %s2, 48
  %s28 = scalar_lea.vmem %s0, 48
  %v29 = vld [vmem:[%s28] sm:$0xff]
  %30 = vst [vmem:[%s27] sm:$0xff] %v29
  %s31 = scalar_lea.vmem %s2, 56
  %s32 = scalar_lea.vmem %s0, 56
  %v33 = vld [vmem:[%s32] sm:$0xff]
  %34 = vst [vmem:[%s31] sm:$0xff] %v33
  %v35 = vld [vmem:[%s1] sm:$0xff]
  %36 = vst [vmem:[%s4] sm:$0xff] %v35
  %s37 = scalar_lea.vmem %s4, 8
  %s38 = scalar_lea.vmem %s1, 8
  %v39 = vld [vmem:[%s38] sm:$0xff]
  %40 = vst [vmem:[%s37] sm:$0xff] %v39
  %s41 = scalar_lea.vmem %s4, 16
  %s42 = scalar_lea.vmem %s1, 16
  %v43 = vld [vmem:[%s42] sm:$0xff]
  %44 = vst [vmem:[%s41] sm:$0xff] %v43
  %s45 = scalar_lea.vmem %s4, 24
  %s46 = scalar_lea.vmem %s1, 24
  %v47 = vld [vmem:[%s46] sm:$0xff]
  %48 = vst [vmem:[%s45] sm:$0xff] %v47
  %s49 = scalar_lea.vmem %s4, 32
  %s50 = scalar_lea.vmem %s1, 32
  %v51 = vld [vmem:[%s50] sm:$0xff]
  %52 = vst [vmem:[%s49] sm:$0xff] %v51
  %s53 = scalar_lea.vmem %s4, 40
  %s54 = scalar_lea.vmem %s1, 40
  %v55 = vld [vmem:[%s54] sm:$0xff]
  %56 = vst [vmem:[%s53] sm:$0xff] %v55
  %s57 = scalar_lea.vmem %s4, 48
  %s58 = scalar_lea.vmem %s1, 48
  %v59 = vld [vmem:[%s58] sm:$0xff]
  %60 = vst [vmem:[%s57] sm:$0xff] %v59
  %s61 = scalar_lea.vmem %s4, 56
  %s62 = scalar_lea.vmem %s1, 56
  %v63 = vld [vmem:[%s62] sm:$0xff]
  %64 = vst [vmem:[%s61] sm:$0xff] %v63

// kernel: mask_estimation_forward.1
$region0: #{mask_estimation_forward.1}
  #allocation0 [shape = 'u32[]', space=smem, size = 0x4, offset = 0x4, fixed_abs, tag = 'smem constant byte address 0x4 - core index']
  #allocation1 [shape = 'u32[144,128]{1,0:T(1,128)}', space=vmem, size = 0x12000, scoped, tag = 'internal scratch']
  %s0 = inlined_call_operand.vmem [shape: f32[2,4,8,32], index: 0, kind: input, shape index: {}]
  %s1 = inlined_call_operand.vmem [shape: f32[4,64,32], index: 1, kind: input, shape index: {}]
  %s2 = inlined_call_operand.vmem [shape: f32[4,64,1], index: 2, kind: input, shape index: {}]
  %s3 = inlined_call_operand.vmem [shape: f32[4,32,64], index: 3, kind: input, shape index: {}]
  %s4 = inlined_call_operand.vmem [shape: f32[4,32,1], index: 4, kind: input, shape index: {}]
  %s5 = inlined_call_operand.vmem [shape: f32[2,2,4,8,8], index: 5, kind: output, shape index: {}]
  %s6 = sld [smem:[#allocation0]]
  $region87: #{mask_estimation_forward.1} parent=0
    _
  %s8 = ssub.s32 1, %s6
  %s9 = scalar_select 0, %s8, %s6
  $region1: #{mask_estimation_forward.1} parent=0
    #allocation2 [shape = 'u8[16384]{0}', space=vmem, size = 0x4000, scoped, tag = 'output window, operand 0']
    loop: start=0, step=1, limit=10
    $region2: #{mask_estimation_forward.1} parent=1 // loop_pre_header
      _
    $region3: #{mask_estimation_forward.1} parent=1 // loop_header
      %s11 = sphi 0, %s15
      %p12 = scmp.ge.s32.totalorder %s11, 10
      %s18 = sphi 0, %s37
      %s19 = sphi 0, %s33
      %s20 = sphi 0, %s29
      %s21 = sphi 0, %s18
      %s22 = sphi 0, %s19
      %s23 = sphi 0, %s20
      %s24 = sphi 0, %s21
      %s25 = sphi 0, %s22
      %s26 = sphi 0, %s23
      %s44 = sphi 0, %s46
      %s47 = sphi 0, %s44
      %s48 = sphi 0, %s47
      %s64 = sphi 0, %s48
      %s70 = sphi 0, %s72
      %s73 = sphi 0, %s70
      %s74 = sphi 0, %s73
      %s90 = sphi 0, %s74
      %s96 = sphi 0, %s98
      %s99 = sphi 0, %s96
      %s100 = sphi 0, %s99
      %s116 = sphi 0, %s100
      %s122 = sphi 0, %s124
      %s125 = sphi 0, %s122
      %s126 = sphi 0, %s125
      %s142 = sphi 0, %s126
      %s148 = sphi 0, %s150
      %s151 = sphi 0, %s148
      %s152 = sphi 0, %s151
      %s168 = sphi 0, %s152
      %s178 = sphi 0, %s180
      %s181 = sphi 0, %s178
      %s182 = sphi 0, %s181
      %s198 = sphi 0, %s182
    $region4: #{mask_estimation_forward.1} parent=1 // loop_header_branch
      %14 = sbr.rel (%p12) target = $region8
    $region5: #{mask_estimation_forward.1} parent=1 // loop_body
      %s16 = ssub.s32 %s11, 1
      %s17 = ssub.s32 %s11, 2
      %s27 = sadd.s32 1, %s20
      %p28 = scmp.ge.s32.totalorder %s27, 1
      %s29 = scalar_select %p28, 0, %s27
      %s30 = sadd.s32 1, %s19
      %s31 = scalar_select %p28, %s30, %s19
      %p32 = scmp.ge.s32.totalorder %s31, 2
      %s33 = scalar_select %p32, 0, %s31
      %s34 = sadd.s32 1, %s18
      %s35 = scalar_select %p32, %s34, %s18
      %p36 = scmp.ge.s32.totalorder %s35, 4
      %s37 = scalar_select %p36, 0, %s35
      %s38 = ssub.s32 %s19, %s33
      %s39 = ssub.s32 %s18, %s37
      %s40 = sor.u32 %s38, %s39
      %s41 = ssub.s32 %s20, %s29
      %s42 = sor.u32 %s40, %s41
      %p43 = scmp.eq.s32.totalorder %s42, 0
      %s45 = sadd.s32 %s44, 1
      %s46 = scalar_select %p43, %s44, %s45
      %p49 = pneg %p43
      %p50 = scmp.eq.s32.totalorder %s11, 7
      %p51 = por %p49, %p50
      %p52 = scmp.ne.s32.totalorder %s44, %s47
      %p53 = scmp.eq.s32.totalorder %s11, 0
      %p54 = por %p52, %p53
      %p55 = scmp.ne.s32.totalorder %s44, %s47
      %p56 = scmp.eq.s32.totalorder %s16, 7
      %p57 = por %p55, %p56
      %p58 = scmp.ne.s32.totalorder %s47, %s48
      %p59 = scmp.eq.s32.totalorder %s16, 0
      %p60 = por %p58, %p59
      %p61 = scmp.ne.s32.totalorder %s47, %s48
      %p62 = scmp.eq.s32.totalorder %s17, 7
      %p63 = por %p61, %p62
      %p65 = scmp.ne.s32.totalorder %s48, %s64
      %p66 = scmp.eq.s32.totalorder %s17, 0
      %p67 = por %p65, %p66
      %s68 = ssub.s32 %s18, %s37
      %p69 = scmp.eq.s32.totalorder %s68, 0
      %s71 = sadd.s32 %s70, 1
      %s72 = scalar_select %p69, %s70, %s71
      %p75 = pneg %p69
      %p76 = scmp.eq.s32.totalorder %s11, 7
      %p77 = por %p75, %p76
      %p78 = scmp.ne.s32.totalorder %s70, %s73
      %p79 = scmp.eq.s32.totalorder %s11, 0
      %p80 = por %p78, %p79
      %p81 = scmp.ne.s32.totalorder %s70, %s73
      %p82 = scmp.eq.s32.totalorder %s16, 7
      %p83 = por %p81, %p82
      %p84 = scmp.ne.s32.totalorder %s73, %s74
      %p85 = scmp.eq.s32.totalorder %s16, 0
      %p86 = por %p84, %p85
      %p87 = scmp.ne.s32.totalorder %s73, %s74
      %p88 = scmp.eq.s32.totalorder %s17, 7
      %p89 = por %p87, %p88
      %p91 = scmp.ne.s32.totalorder %s74, %s90
      %p92 = scmp.eq.s32.totalorder %s17, 0
      %p93 = por %p91, %p92
      %s94 = ssub.s32 %s18, %s37
      %p95 = scmp.eq.s32.totalorder %s94, 0
      %s97 = sadd.s32 %s96, 1
      %s98 = scalar_select %p95, %s96, %s97
      %p101 = pneg %p95
      %p102 = scmp.eq.s32.totalorder %s11, 7
      %p103 = por %p101, %p102
      %p104 = scmp.ne.s32.totalorder %s96, %s99
      %p105 = scmp.eq.s32.totalorder %s11, 0
      %p106 = por %p104, %p105
      %p107 = scmp.ne.s32.totalorder %s96, %s99
      %p108 = scmp.eq.s32.totalorder %s16, 7
      %p109 = por %p107, %p108
      %p110 = scmp.ne.s32.totalorder %s99, %s100
      %p111 = scmp.eq.s32.totalorder %s16, 0
      %p112 = por %p110, %p111
      %p113 = scmp.ne.s32.totalorder %s99, %s100
      %p114 = scmp.eq.s32.totalorder %s17, 7
      %p115 = por %p113, %p114
      %p117 = scmp.ne.s32.totalorder %s100, %s116
      %p118 = scmp.eq.s32.totalorder %s17, 0
      %p119 = por %p117, %p118
      %s120 = ssub.s32 %s18, %s37
      %p121 = scmp.eq.s32.totalorder %s120, 0
      %s123 = sadd.s32 %s122, 1
      %s124 = scalar_select %p121, %s122, %s123
      %p127 = pneg %p121
      %p128 = scmp.eq.s32.totalorder %s11, 7
      %p129 = por %p127, %p128
      %p130 = scmp.ne.s32.totalorder %s122, %s125
      %p131 = scmp.eq.s32.totalorder %s11, 0
      %p132 = por %p130, %p131
      %p133 = scmp.ne.s32.totalorder %s122, %s125
      %p134 = scmp.eq.s32.totalorder %s16, 7
      %p135 = por %p133, %p134
      %p136 = scmp.ne.s32.totalorder %s125, %s126
      %p137 = scmp.eq.s32.totalorder %s16, 0
      %p138 = por %p136, %p137
      %p139 = scmp.ne.s32.totalorder %s125, %s126
      %p140 = scmp.eq.s32.totalorder %s17, 7
      %p141 = por %p139, %p140
      %p143 = scmp.ne.s32.totalorder %s126, %s142
      %p144 = scmp.eq.s32.totalorder %s17, 0
      %p145 = por %p143, %p144
      %s146 = ssub.s32 %s18, %s37
      %p147 = scmp.eq.s32.totalorder %s146, 0
      %s149 = sadd.s32 %s148, 1
      %s150 = scalar_select %p147, %s148, %s149
      %p153 = pneg %p147
      %p154 = scmp.eq.s32.totalorder %s11, 7
      %p155 = por %p153, %p154
      %p156 = scmp.ne.s32.totalorder %s148, %s151
      %p157 = scmp.eq.s32.totalorder %s11, 0
      %p158 = por %p156, %p157
      %p159 = scmp.ne.s32.totalorder %s148, %s151
      %p160 = scmp.eq.s32.totalorder %s16, 7
      %p161 = por %p159, %p160
      %p162 = scmp.ne.s32.totalorder %s151, %s152
      %p163 = scmp.eq.s32.totalorder %s16, 0
      %p164 = por %p162, %p163
      %p165 = scmp.ne.s32.totalorder %s151, %s152
      %p166 = scmp.eq.s32.totalorder %s17, 7
      %p167 = por %p165, %p166
      %p169 = scmp.ne.s32.totalorder %s152, %s168
      %p170 = scmp.eq.s32.totalorder %s17, 0
      %p171 = por %p169, %p170
      %s172 = ssub.s32 %s19, %s33
      %s173 = ssub.s32 %s18, %s37
      %s174 = sor.u32 %s172, %s173
      %s175 = ssub.s32 %s20, %s29
      %s176 = sor.u32 %s174, %s175
      %p177 = scmp.eq.s32.totalorder %s176, 0
      %s179 = sadd.s32 %s178, 1
      %s180 = scalar_select %p177, %s178, %s179
      %p183 = pneg %p177
      %p184 = scmp.eq.s32.totalorder %s11, 7
      %p185 = por %p183, %p184
      %p186 = scmp.ne.s32.totalorder %s178, %s181
      %p187 = scmp.eq.s32.totalorder %s11, 0
      %p188 = por %p186, %p187
      %p189 = scmp.ne.s32.totalorder %s178, %s181
      %p190 = scmp.eq.s32.totalorder %s16, 7
      %p191 = por %p189, %p190
      %p192 = scmp.ne.s32.totalorder %s181, %s182
      %p193 = scmp.eq.s32.totalorder %s16, 0
      %p194 = por %p192, %p193
      %p195 = scmp.ne.s32.totalorder %s181, %s182
      %p196 = scmp.eq.s32.totalorder %s17, 7
      %p197 = por %p195, %p196
      %p199 = scmp.ne.s32.totalorder %s182, %s198
      %p200 = scmp.eq.s32.totalorder %s17, 0
      %p201 = por %p199, %p200
      %p202 = scmp.le.s32.totalorder 1, %s11
      %p203 = scmp.lt.s32.totalorder %s11, 9
      %p204 = pnand %p202, %p203
      %p205 = pneg %p204
      // Predicated region
      $region9: #{mask_estimation_forward.1} parent=5 // pred_check
        _
      $region10: #{mask_estimation_forward.1} parent=5 // pred_check_branch
        %207 = sbr.rel (%p204) target = $region12
      $region11: #{mask_estimation_forward.1} parent=5 // pred_region
        %s208 = ssub.s32 %s11, 1
      $region12: #{mask_estimation_forward.1} parent=5 // pred_fallthru
        _
      %p209 = scmp.lt.s32.totalorder %s11, 8
      // Predicated region
      $region13: #{mask_estimation_forward.1} parent=5 // pred_check
        %p210 = pneg %p209
      $region14: #{mask_estimation_forward.1} parent=5 // pred_check_branch
        %212 = sbr.rel (%p210) target = $region16
      $region15: #{mask_estimation_forward.1} parent=5 // pred_region
        // Predicated region
        $region17: #{mask_estimation_forward.1} parent=15 // pred_check
          %p213 = pneg %p54
        $region18: #{mask_estimation_forward.1} parent=15 // pred_check_branch
          %215 = sbr.rel (%p213) target = $region20
        $region19: #{mask_estimation_forward.1} parent=15 // pred_region
          %p216 = scmp.lt.s32.totalorder %s19, 1
          %s217 = scalar_select %p216, %s19, 1
          %p218 = scmp.lt.s32.totalorder %s18, 3
          %s219 = scalar_select %p218, %s18, 3
          %p220 = scmp.lt.s32.totalorder %s20, 0
          %s221 = scalar_select %p220, %s20, 0
          %s222 = sadd.s32 %s221, %s219
          %s223 = smul.addr %s217, 4
          %s224 = sadd.s32 %s222, %s223
          %s225 = smul.addr %s224, 8
          %s226 = scalar_lea.vmem %s0, %s225
        $region20: #{mask_estimation_forward.1} parent=15 // pred_fallthru
          _
        // Predicated region
        $region21: #{mask_estimation_forward.1} parent=15 // pred_check
          %p227 = pneg %p80
        $region22: #{mask_estimation_forward.1} parent=15 // pred_check_branch
          %229 = sbr.rel (%p227) target = $region24
        $region23: #{mask_estimation_forward.1} parent=15 // pred_region
          %p230 = scmp.lt.s32.totalorder %s18, 3
          %s231 = scalar_select %p230, %s18, 3
          %s232 = smul.addr %s231, 8
          %s233 = smul.addr %s232, 8
          %s234 = scalar_lea.vmem %s1, %s233
        $region24: #{mask_estimation_forward.1} parent=15 // pred_fallthru
          _
        // Predicated region
        $region25: #{mask_estimation_forward.1} parent=15 // pred_check
          %p235 = pneg %p106
        $region26: #{mask_estimation_forward.1} parent=15 // pred_check_branch
          %237 = sbr.rel (%p235) target = $region28
        $region27: #{mask_estimation_forward.1} parent=15 // pred_region
          %p238 = scmp.lt.s32.totalorder %s18, 3
          %s239 = scalar_select %p238, %s18, 3
          %s240 = smul.addr %s239, 8
          %s241 = smul.addr %s240, 8
          %s242 = scalar_lea.vmem %s2, %s241
        $region28: #{mask_estimation_forward.1} parent=15 // pred_fallthru
          _
        // Predicated region
        $region29: #{mask_estimation_forward.1} parent=15 // pred_check
          %p243 = pneg %p132
        $region30: #{mask_estimation_forward.1} parent=15 // pred_check_branch
          %245 = sbr.rel (%p243) target = $region32
        $region31: #{mask_estimation_forward.1} parent=15 // pred_region
          %p246 = scmp.lt.s32.totalorder %s18, 3
          %s247 = scalar_select %p246, %s18, 3
          %s248 = smul.addr %s247, 4
          %s249 = smul.addr %s248, 8
          %s250 = scalar_lea.vmem %s3, %s249
        $region32: #{mask_estimation_forward.1} parent=15 // pred_fallthru
          _
        // Predicated region
        $region33: #{mask_estimation_forward.1} parent=15 // pred_check
          %p251 = pneg %p158
        $region34: #{mask_estimation_forward.1} parent=15 // pred_check_branch
          %253 = sbr.rel (%p251) target = $region36
        $region35: #{mask_estimation_forward.1} parent=15 // pred_region
          %p254 = scmp.lt.s32.totalorder %s18, 3
          %s255 = scalar_select %p254, %s18, 3
          %s256 = smul.addr %s255, 4
          %s257 = smul.addr %s256, 8
          %s258 = scalar_lea.vmem %s4, %s257
        $region36: #{mask_estimation_forward.1} parent=15 // pred_fallthru
          _
      $region16: #{mask_estimation_forward.1} parent=5 // pred_fallthru
        _
      %p259 = scmp.le.s32.totalorder 1, %s11
      %p260 = scmp.lt.s32.totalorder %s11, 9
      %p261 = pnand %p259, %p260
      %p262 = pneg %p261
      // Predicated region
      $region37: #{mask_estimation_forward.1} parent=5 // pred_check
        _
      $region38: #{mask_estimation_forward.1} parent=5 // pred_check_branch
        %264 = sbr.rel (%p261) target = $region40
      $region39: #{mask_estimation_forward.1} parent=5 // pred_region
        %s265 = ssub.s32 %s11, 1
        %p266 = scmp.lt.s32.totalorder %s22, 1
        %s267 = scalar_select %p266, %s22, 1
        %p268 = scmp.lt.s32.totalorder %s21, 3
        %s269 = scalar_select %p268, %s21, 3
        %p270 = scmp.lt.s32.totalorder %s23, 0
        %s271 = scalar_select %p270, %s23, 0
        %s272 = sadd.s32 %s271, %s269
        %s273 = smul.addr %s267, 4
        %s274 = sadd.s32 %s272, %s273
        %s275 = smul.addr %s274, 8
        %s276 = scalar_lea.vmem %s0, %s275
        %p277 = pneg %p60
        %p278 = pneg %p57
        %p279 = scmp.lt.s32.totalorder %s21, 3
        %s280 = scalar_select %p279, %s21, 3
        %s281 = smul.addr %s280, 8
        %s282 = smul.addr %s281, 8
        %s283 = scalar_lea.vmem %s1, %s282
        %p284 = pneg %p86
        %p285 = pneg %p83
        %p286 = scmp.lt.s32.totalorder %s21, 3
        %s287 = scalar_select %p286, %s21, 3
        %s288 = smul.addr %s287, 8
        %s289 = smul.addr %s288, 8
        %s290 = scalar_lea.vmem %s2, %s289
        %p291 = pneg %p112
        %p292 = pneg %p109
        %p293 = scmp.lt.s32.totalorder %s21, 3
        %s294 = scalar_select %p293, %s21, 3
        %s295 = smul.addr %s294, 4
        %s296 = smul.addr %s295, 8
        %s297 = scalar_lea.vmem %s3, %s296
        %p298 = pneg %p138
        %p299 = pneg %p135
        %p300 = scmp.lt.s32.totalorder %s21, 3
        %s301 = scalar_select %p300, %s21, 3
        %s302 = smul.addr %s301, 4
        %s303 = smul.addr %s302, 8
        %s304 = scalar_lea.vmem %s4, %s303
        %p305 = pneg %p164
        %p306 = pneg %p161
        %p307 = pneg %p194
        %p308 = pneg %p191
        %s309 = sand.u32 %s181, 1
        %s310 = sand.u32 %s181, 1
        %s311 = smul.addr %s310, 16
        %s312 = scalar_lea.vmem [#allocation2], %s311
        %p313 = scmp.lt.s32.totalorder %s22, 1
        %s314 = scalar_select %p313, %s22, 1
        %p315 = scmp.lt.s32.totalorder %s21, 3
        %s316 = scalar_select %p315, %s21, 3
        %p317 = scmp.lt.s32.totalorder %s23, 0
        %s318 = scalar_select %p317, %s23, 0
        %s319 = sadd.s32 %s318, %s316
        %s320 = smul.addr %s314, 4
        %s321 = sadd.s32 %s319, %s320
        %s322 = smul.addr %s321, 8
        %s323 = scalar_lea.vmem %s0, %s322
        %p324 = scmp.lt.s32.totalorder %s21, 3
        %s325 = scalar_select %p324, %s21, 3
        %s326 = smul.addr %s325, 8
        %s327 = smul.addr %s326, 8
        %s328 = scalar_lea.vmem %s1, %s327
        %p329 = scmp.lt.s32.totalorder %s21, 3
        %s330 = scalar_select %p329, %s21, 3
        %s331 = smul.addr %s330, 8
        %s332 = smul.addr %s331, 8
        %s333 = scalar_lea.vmem %s2, %s332
        %p334 = scmp.lt.s32.totalorder %s21, 3
        %s335 = scalar_select %p334, %s21, 3
        %s336 = smul.addr %s335, 4
        %s337 = smul.addr %s336, 8
        %s338 = scalar_lea.vmem %s3, %s337
        %p339 = scmp.lt.s32.totalorder %s21, 3
        %s340 = scalar_select %p339, %s21, 3
        %s341 = smul.addr %s340, 4
        %s342 = smul.addr %s341, 8
        %s343 = scalar_lea.vmem %s4, %s342
        %v344 = vld [vmem:[%s323] sm:$0xff]
        %vm345 = vcmask 261120
        %v346 = vsel %vm345, %v344, 0.0
        %347 = vadd.xlane.f32.xlu0 %v346
        %v348 = vpop.xlane.xlu0 %347
        %v349 = vrcp.pop 32.0
        %v350 = vmul.f32 %v348, %v349
        %v351 = vsub.f32 %v344, %v350
        %v352 = vmul.f32 %v351, %v351
        %v353 = vsel %vm345, %v352, 0.0
        %354 = vadd.xlane.f32.xlu0 %v353
        %v355 = vpop.xlane.xlu0 %354
        %v356 = vmul.f32 %v355, %v349
        %v357 = vadd.f32 %v356, 1e-05
        %v358 = vrsqrt.pop %v357
        %v359 = vmul.f32 %v351, %v358
        %v360 = vld [vmem:[%s328] sm:$0xff]
        %v361 = vld [vmem:[%s328 + $0x8] sm:$0xff]
        %v362 = vld [vmem:[%s328 + $0x10] sm:$0xff]
        %v363 = vld [vmem:[%s328 + $0x18] sm:$0xff]
        %v364 = vld [vmem:[%s328 + $0x20] sm:$0xff]
        %v365 = vld [vmem:[%s328 + $0x28] sm:$0xff]
        %v366 = vld [vmem:[%s328 + $0x30] sm:$0xff]
        %v367 = vld [vmem:[%s328 + $0x38] sm:$0xff]
        %v368 = vld [vmem:[%s333] sm:$0xff]
        %v369 = vld [vmem:[%s333 + $0x8] sm:$0xff]
        %v370 = vld [vmem:[%s333 + $0x10] sm:$0xff]
        %v371 = vld [vmem:[%s333 + $0x18] sm:$0xff]
        %v372 = vld [vmem:[%s333 + $0x20] sm:$0xff]
        %v373 = vld [vmem:[%s333 + $0x28] sm:$0xff]
        %v374 = vld [vmem:[%s333 + $0x30] sm:$0xff]
        %v375 = vld [vmem:[%s333 + $0x38] sm:$0xff]
        %377 = vset.pattern.permute.xlu0 0
        %378 = vperm.xlu0 %377, %v368
        %v379 = vpop.permute.xlu0 %378
        %382 = vset.pattern.permute.xlu0 0
        %383 = vperm.xlu0 %382, %v369
        %v384 = vpop.permute.xlu0 %383
        %387 = vset.pattern.permute.xlu0 0
        %388 = vperm.xlu0 %387, %v370
        %v389 = vpop.permute.xlu0 %388
        %392 = vset.pattern.permute.xlu0 0
        %393 = vperm.xlu0 %392, %v371
        %v394 = vpop.permute.xlu0 %393
        %397 = vset.pattern.permute.xlu0 0
        %398 = vperm.xlu0 %397, %v372
        %v399 = vpop.permute.xlu0 %398
        %402 = vset.pattern.permute.xlu0 0
        %403 = vperm.xlu0 %402, %v373
        %v404 = vpop.permute.xlu0 %403
        %407 = vset.pattern.permute.xlu0 0
        %408 = vperm.xlu0 %407, %v374
        %v409 = vpop.permute.xlu0 %408
        %412 = vset.pattern.permute.xlu0 0
        %413 = vperm.xlu0 %412, %v375
        %v414 = vpop.permute.xlu0 %413
        %v417 = vsel %vm345, %v360, 0
        %v420 = vsel %vm345, %v361, 0
        %v423 = vsel %vm345, %v362, 0
        %v426 = vsel %vm345, %v363, 0
        %v429 = vsel %vm345, %v364, 0
        %v432 = vsel %vm345, %v365, 0
        %v435 = vsel %vm345, %v366, 0
        %v438 = vsel %vm345, %v367, 0
        %v441 = vsel %vm345, %v359, 0
        %443 = vmatprep.subr.mxu0 0.0
        %444 = vmatpush1.xpose.msra.mxu0 %v441
        %445 = vmatprep.subr.mxu0 0.0
        %446 = vmatpush1.xpose.msra.mxu0 0.0
        %447 = vmatprep.subr.mxu0 0.0
        %448 = vmatpush1.xpose.msra.mxu0 0.0
        %449 = vmatprep.subr.mxu0 0.0
        %450 = vmatpush1.xpose.msra.mxu0 0.0
        %451 = vmatprep.subr.mxu0 0.0
        %452 = vmatpush1.xpose.msra.mxu0 0.0
        %453 = vmatprep.subr.mxu0 0.0
        %454 = vmatpush1.xpose.msra.mxu0 0.0
        %455 = vmatprep.subr.mxu0 0.0
        %456 = vmatpush1.xpose.msra.mxu0 0.0
        %457 = vmatprep.subr.mxu0 0.0
        %458 = vmatpush1.xpose.msra.mxu0 0.0
        %459 = vmatprep.subr.mxu0 0.0
        %460 = vmatpush1.xpose.msra.mxu0 0.0
        %461 = vmatprep.subr.mxu0 0.0
        %462 = vmatpush1.xpose.msra.mxu0 0.0
        %463 = vmatprep.subr.mxu0 0.0
        %464 = vmatpush1.xpose.msra.mxu0 0.0
        %465 = vmatprep.subr.mxu0 0.0
        %466 = vmatpush1.xpose.msra.mxu0 0.0
        %467 = vmatprep.subr.mxu0 0.0
        %468 = vmatpush1.xpose.msra.mxu0 0.0
        %469 = vmatprep.subr.mxu0 0.0
        %470 = vmatpush1.xpose.msra.mxu0 0.0
        %471 = vmatprep.subr.mxu0 0.0
        %472 = vmatpush1.xpose.msra.mxu0 0.0
        %473 = vmatprep.subr.mxu0 0.0
        %474 = vmatpush1.xpose.msra.mxu0 0.0
        %475 = vmatprep.subr.mxu0 0.0
        %476 = vmatpush1.xpose.msra.mxu0 0.0
        %477 = vmatprep.subr.mxu0 0.0
        %478 = vmatpush1.xpose.msra.mxu0 0.0
        %479 = vmatprep.subr.mxu0 0.0
        %480 = vmatpush1.xpose.msra.mxu0 0.0
        %481 = vmatprep.subr.mxu0 0.0
        %482 = vmatpush1.xpose.msra.mxu0 0.0
        %483 = vmatprep.subr.mxu0 0.0
        %484 = vmatpush1.xpose.msra.mxu0 0.0
        %485 = vmatprep.subr.mxu0 0.0
        %486 = vmatpush1.xpose.msra.mxu0 0.0
        %487 = vmatprep.subr.mxu0 0.0
        %488 = vmatpush1.xpose.msra.mxu0 0.0
        %489 = vmatprep.subr.mxu0 0.0
        %490 = vmatpush1.xpose.msra.mxu0 0.0
        %491 = vmatprep.subr.mxu0 0.0
        %492 = vmatpush1.xpose.msra.mxu0 0.0
        %493 = vmatprep.subr.mxu0 0.0
        %494 = vmatpush1.xpose.msra.mxu0 0.0
        %495 = vmatprep.subr.mxu0 0.0
        %496 = vmatpush1.xpose.msra.mxu0 0.0
        %497 = vmatprep.subr.mxu0 0.0
        %498 = vmatpush1.xpose.msra.mxu0 0.0
        %499 = vmatprep.subr.mxu0 0.0
        %500 = vmatpush1.xpose.msra.mxu0 0.0
        %501 = vmatprep.subr.mxu0 0.0
        %502 = vmatpush1.xpose.msra.mxu0 0.0
        %503 = vmatprep.subr.mxu0 0.0
        %504 = vmatpush1.xpose.msra.mxu0 0.0
        %505 = vmatprep.subr.mxu0 0.0
        %506 = vmatpush1.xpose.msra.mxu0 0.0
        %507 = vmatprep.mubr.f32.mxu0 0.0
        %508 = vmatmul.mubr.f32.gmra.mrb[0].mxu0 %v417
        %v509 = vpop.f32.mrb[0].mxu0
        %v510 = vadd.f32 %v379, %v509
        %v511 = vpop.f32.mrb[0].mxu0
        %512 = vmatprep.mubr.f32.mxu0 0.0
        %513 = vmatmul.mubr.f32.gmra.mrb[0].mxu0 %v420
        %v514 = vpop.f32.mrb[0].mxu0
        %v515 = vadd.f32 %v384, %v514
        %v516 = vpop.f32.mrb[0].mxu0
        %517 = vmatprep.mubr.f32.mxu0 0.0
        %518 = vmatmul.mubr.f32.gmra.mrb[0].mxu0 %v423
        %v519 = vpop.f32.mrb[0].mxu0
        %v520 = vadd.f32 %v389, %v519
        %v521 = vpop.f32.mrb[0].mxu0
        %522 = vmatprep.mubr.f32.mxu0 0.0
        %523 = vmatmul.mubr.f32.gmra.mrb[0].mxu0 %v426
        %v524 = vpop.f32.mrb[0].mxu0
        %v525 = vadd.f32 %v394, %v524
        %v526 = vpop.f32.mrb[0].mxu0
        %527 = vmatprep.mubr.f32.mxu0 0.0
        %528 = vmatmul.mubr.f32.gmra.mrb[0].mxu0 %v429
        %v529 = vpop.f32.mrb[0].mxu0
        %v530 = vadd.f32 %v399, %v529
        %v531 = vpop.f32.mrb[0].mxu0
        %532 = vmatprep.mubr.f32.mxu0 0.0
        %533 = vmatmul.mubr.f32.gmra.mrb[0].mxu0 %v432
        %v534 = vpop.f32.mrb[0].mxu0
        %v535 = vadd.f32 %v404, %v534
        %v536 = vpop.f32.mrb[0].mxu0
        %537 = vmatprep.mubr.f32.mxu0 0.0
        %538 = vmatmul.mubr.f32.gmra.mrb[0].mxu0 %v435
        %v539 = vpop.f32.mrb[0].mxu0
        %v540 = vadd.f32 %v409, %v539
        %v541 = vpop.f32.mrb[0].mxu0
        %542 = vmatprep.mubr.f32.mxu0 0.0
        %543 = vmatmul.mubr.f32.gmra.mrb[0].mxu0 %v438
        %v544 = vpop.f32.mrb[0].mxu0
        %v545 = vadd.f32 %v414, %v544
        %v546 = vpop.f32.mrb[0].mxu0
        %547 = vdwg.mxu0
        %v548 = vtanh.pop %v510
        %v549 = vtanh.pop %v515
        %v550 = vtanh.pop %v520
        %v551 = vtanh.pop %v525
        %v552 = vtanh.pop %v530
        %v553 = vtanh.pop %v535
        %v554 = vtanh.pop %v540
        %v555 = vtanh.pop %v545
        %v556 = vld [vmem:[%s338] sm:$0xff]
        %v557 = vld [vmem:[%s338 + $0x8] sm:$0xff]
        %v558 = vld [vmem:[%s338 + $0x10] sm:$0xff]
        %v559 = vld [vmem:[%s338 + $0x18] sm:$0xff]
        %v560 = vld [vmem:[%s343] sm:$0xff]
        %v561 = vld [vmem:[%s343 + $0x8] sm:$0xff]
        %v562 = vld [vmem:[%s343 + $0x10] sm:$0xff]
        %v563 = vld [vmem:[%s343 + $0x18] sm:$0xff]
        %565 = vset.pattern.permute.xlu0 0
        %566 = vperm.xlu0 %565, %v560
        %v567 = vpop.permute.xlu0 %566
        %570 = vset.pattern.permute.xlu0 0
        %571 = vperm.xlu0 %570, %v561
        %v572 = vpop.permute.xlu0 %571
        %575 = vset.pattern.permute.xlu0 0
        %576 = vperm.xlu0 %575, %v562
        %v577 = vpop.permute.xlu0 %576
        %580 = vset.pattern.permute.xlu0 0
        %581 = vperm.xlu0 %580, %v563
        %v582 = vpop.permute.xlu0 %581
        %vm584 = vcmask 523264
        %v586 = vsel %vm584, %v556, 0
        %v589 = vsel %vm584, %v557, 0
        %v592 = vsel %vm584, %v558, 0
        %v595 = vsel %vm584, %v559, 0
        %597 = vmatprep.subr.mxu0 0.0
        %598 = vmatpush1.msra.mxu0 %v548
        %599 = vmatprep.subr.mxu0 0.0
        %600 = vmatpush1.msra.mxu0 %v549
        %601 = vmatprep.subr.mxu0 0.0
        %602 = vmatpush1.msra.mxu0 %v550
        %603 = vmatprep.subr.mxu0 0.0
        %604 = vmatpush1.msra.mxu0 %v551
        %605 = vmatprep.subr.mxu0 0.0
        %606 = vmatpush1.msra.mxu0 %v552
        %607 = vmatprep.subr.mxu0 0.0
        %608 = vmatpush1.msra.mxu0 %v553
        %609 = vmatprep.subr.mxu0 0.0
        %610 = vmatpush1.msra.mxu0 %v554
        %611 = vmatprep.subr.mxu0 0.0
        %612 = vmatpush1.msra.mxu0 %v555
        %613 = vmatprep.subr.mxu0 0.0
        %614 = vmatpush1.msra.mxu0 0.0
        %615 = vmatprep.subr.mxu0 0.0
        %616 = vmatpush1.msra.mxu0 0.0
        %617 = vmatprep.subr.mxu0 0.0
        %618 = vmatpush1.msra.mxu0 0.0
        %619 = vmatprep.subr.mxu0 0.0
        %620 = vmatpush1.msra.mxu0 0.0
        %621 = vmatprep.subr.mxu0 0.0
        %622 = vmatpush1.msra.mxu0 0.0
        %623 = vmatprep.subr.mxu0 0.0
        %624 = vmatpush1.msra.mxu0 0.0
        %625 = vmatprep.subr.mxu0 0.0
        %626 = vmatpush1.msra.mxu0 0.0
        %627 = vmatprep.subr.mxu0 0.0
        %628 = vmatpush1.msra.mxu0 0.0
        %629 = vmatprep.subr.mxu0 0.0
        %630 = vmatpush1.msra.mxu0 0.0
        %631 = vmatprep.subr.mxu0 0.0
        %632 = vmatpush1.msra.mxu0 0.0
        %633 = vmatprep.subr.mxu0 0.0
        %634 = vmatpush1.msra.mxu0 0.0
        %635 = vmatprep.subr.mxu0 0.0
        %636 = vmatpush1.msra.mxu0 0.0
        %637 = vmatprep.subr.mxu0 0.0
        %638 = vmatpush1.msra.mxu0 0.0
        %639 = vmatprep.subr.mxu0 0.0
        %640 = vmatpush1.msra.mxu0 0.0
        %641 = vmatprep.subr.mxu0 0.0
        %642 = vmatpush1.msra.mxu0 0.0
        %643 = vmatprep.subr.mxu0 0.0
        %644 = vmatpush1.msra.mxu0 0.0
        %645 = vmatprep.subr.mxu0 0.0
        %646 = vmatpush1.msra.mxu0 0.0
        %647 = vmatprep.subr.mxu0 0.0
        %648 = vmatpush1.msra.mxu0 0.0
        %649 = vmatprep.subr.mxu0 0.0
        %650 = vmatpush1.msra.mxu0 0.0
        %651 = vmatprep.subr.mxu0 0.0
        %652 = vmatpush1.msra.mxu0 0.0
        %653 = vmatprep.subr.mxu0 0.0
        %654 = vmatpush1.msra.mxu0 0.0
        %655 = vmatprep.subr.mxu0 0.0
        %656 = vmatpush1.msra.mxu0 0.0
        %657 = vmatprep.subr.mxu0 0.0
        %658 = vmatpush1.msra.mxu0 0.0
        %659 = vmatprep.subr.mxu0 0.0
        %660 = vmatpush1.msra.mxu0 0.0
        %661 = vmatprep.mubr.f32.mxu0 0.0
        %662 = vmatmul.mubr.f32.gmra.mrb[0].mxu0 %v586
        %v663 = vpop.f32.mrb[0].mxu0
        %v664 = vadd.f32 %v567, %v663
        %v665 = vpop.f32.mrb[0].mxu0
        %666 = vmatprep.mubr.f32.mxu0 0.0
        %667 = vmatmul.mubr.f32.gmra.mrb[0].mxu0 %v589
        %v668 = vpop.f32.mrb[0].mxu0
        %v669 = vadd.f32 %v572, %v668
        %v670 = vpop.f32.mrb[0].mxu0
        %671 = vmatprep.mubr.f32.mxu0 0.0
        %672 = vmatmul.mubr.f32.gmra.mrb[0].mxu0 %v592
        %v673 = vpop.f32.mrb[0].mxu0
        %v674 = vadd.f32 %v577, %v673
        %v675 = vpop.f32.mrb[0].mxu0
        %676 = vmatprep.mubr.f32.mxu0 0.0
        %677 = vmatmul.mubr.f32.gmra.mrb[0].mxu0 %v595
        %v678 = vpop.f32.mrb[0].mxu0
        %v679 = vadd.f32 %v582, %v678
        %v680 = vpop.f32.mrb[0].mxu0
        %681 = vdwg.mxu0
        %v682 = vxor.u32 %v674, 2147483648
        %v683 = vxor.u32 %v679, 2147483648
        %v684 = vmul.f32 %v682, 1.442695
        %v685 = vpow.pop %v684
        %v686 = vmul.f32 %v683, 1.442695
        %v687 = vpow.pop %v686
        %v688 = vadd.f32 %v685, 1.0
        %v689 = vadd.f32 %v687, 1.0
        %v690 = vrcp.pop %v688
        %v691 = vmul.f32 1.0, %v690
        %v692 = vrcp.pop %v689
        %v693 = vmul.f32 1.0, %v692
        %v694 = vmul.f32 %v664, %v691
        %v695 = vmul.f32 %v669, %v693
        %vm696 = vcmask 64512
        %697 = vst.msk [vmem:[%s312] sm:$0xff] %vm696, %v694
        %s698 = scalar_lea.vmem %s312, 8 [#allocation2]
        %699 = vst.msk [vmem:[%s698] sm:$0xff] %vm696, %v695
        %s700 = sand.u32 %s181, 1
        %s701 = sand.u32 %s181, 1
        %s702 = smul.addr %s701, 16
        %s703 = scalar_lea.vmem [#allocation2], %s702
        // Predicated region
        $region41: #{mask_estimation_forward.1} parent=39 // pred_check
          %p704 = pneg %p191
        $region42: #{mask_estimation_forward.1} parent=39 // pred_check_branch
          %706 = sbr.rel (%p704) target = $region44
        $region43: #{mask_estimation_forward.1} parent=39 // pred_region
          %s707 = sadd.s32 %s23, %s21
          %s708 = smul.addr %s22, 8
          %s709 = sadd.s32 %s707, %s708
          %s710 = smul.addr %s709, 8
          %s711 = scalar_lea.vmem %s5, %s710
          // Predicated region
          $region45: #{mask_estimation_forward.1} parent=43 // pred_check
            _
          $region46: #{mask_estimation_forward.1} parent=43 // pred_check_branch
            %713 = sbr.rel (0) target = $region48
          $region47: #{mask_estimation_forward.1} parent=43 // pred_region
            // Predicated region
            $region49: #{mask_estimation_forward.1} parent=47 // pred_check
              _
            $region50: #{mask_estimation_forward.1} parent=47 // pred_check_branch
              %715 = sbr.rel (0) target = $region52
            $region51: #{mask_estimation_forward.1} parent=47 // pred_region
              // Predicated region
              $region64: #{mask_estimation_forward.1} parent=51 // pred_check
                _
              $region65: #{mask_estimation_forward.1} parent=51 // pred_check_branch
                %732 = sbr.rel (0) target = $region67
              $region66: #{mask_estimation_forward.1} parent=51 // pred_region
                loop: start=0, step=1, limit=1
                $region68: #{mask_estimation_forward.1} parent=66 // loop_pre_header
                  _
                $region69: #{mask_estimation_forward.1} parent=66 // loop_header
                  %s734 = sphi 0, %s738
                  %p735 = scmp.ge.s32.totalorder %s734, 1
                  %s739 = sphi %s703, %s703
                  %s740 = sphi %s711, %s711
                $region70: #{mask_estimation_forward.1} parent=66 // loop_header_branch
                  %737 = sbr.rel (%p735) target = $region74
                $region71: #{mask_estimation_forward.1} parent=66 // loop_body
                  %v741 = vld [vmem:[%s739] sm:$0xff]
                  %742 = vst [vmem:[%s740] sm:$0xff] %v741
                  %v743 = vld [vmem:[%s739 + $0x8] sm:$0xff]
                  %744 = vst [vmem:[%s740 + $0x20] sm:$0xff] %v743
                $region72: #{mask_estimation_forward.1} parent=66 // loop_footer
                  %s738 = sadd.s32 1, %s734
                $region73: #{mask_estimation_forward.1} parent=66 // loop_footer_branch
                  %733 = sbr.rel target = $region69
                $region74: #{mask_estimation_forward.1} parent=66 // loop_exit
                  _
              $region67: #{mask_estimation_forward.1} parent=51 // pred_fallthru
                _
              // Predicated region
              $region75: #{mask_estimation_forward.1} parent=51 // pred_check
                _
              $region76: #{mask_estimation_forward.1} parent=51 // pred_check_branch
                %746 = sbr.rel target = $region78
              $region77: #{mask_estimation_forward.1} parent=51 // pred_region
                _
              $region78: #{mask_estimation_forward.1} parent=51 // pred_fallthru
                _
            $region52: #{mask_estimation_forward.1} parent=47 // pred_fallthru
              _
            // Predicated region
            $region53: #{mask_estimation_forward.1} parent=47 // pred_check
              _
            $region54: #{mask_estimation_forward.1} parent=47 // pred_check_branch
              %717 = sbr.rel target = $region56
            $region55: #{mask_estimation_forward.1} parent=47 // pred_region
              loop: start=0, step=1, limit=1
              $region57: #{mask_estimation_forward.1} parent=55 // loop_pre_header
                _
              $region58: #{mask_estimation_forward.1} parent=55 // loop_header
                %s720 = sphi 0, %s724
                %p721 = scmp.ge.s32.totalorder %s720, 1
                %s725 = sphi %s703, %s703
                %s726 = sphi %s711, %s711
              $region59: #{mask_estimation_forward.1} parent=55 // loop_header_branch
                %723 = sbr.rel (%p721) target = $region63
              $region60: #{mask_estimation_forward.1} parent=55 // loop_body
                %v727 = vld [vmem:[%s725] sm:$0xff]
                %728 = vst [vmem:[%s726] sm:$0xff] %v727
                %v729 = vld [vmem:[%s725 + $0x8] sm:$0xff]
                %730 = vst [vmem:[%s726 + $0x20] sm:$0xff] %v729
              $region61: #{mask_estimation_forward.1} parent=55 // loop_footer
                %s724 = sadd.s32 1, %s720
              $region62: #{mask_estimation_forward.1} parent=55 // loop_footer_branch
                %719 = sbr.rel target = $region58
              $region63: #{mask_estimation_forward.1} parent=55 // loop_exit
                _
            $region56: #{mask_estimation_forward.1} parent=47 // pred_fallthru
              _
          $region48: #{mask_estimation_forward.1} parent=43 // pred_fallthru
            _
          %747 = vnop
        $region44: #{mask_estimation_forward.1} parent=39 // pred_fallthru
          _
      $region40: #{mask_estimation_forward.1} parent=5 // pred_fallthru
        _
      %p748 = scmp.le.s32.totalorder 2, %s11
      // Predicated region
      $region79: #{mask_estimation_forward.1} parent=5 // pred_check
        %p749 = pneg %p748
      $region80: #{mask_estimation_forward.1} parent=5 // pred_check_branch
        %751 = sbr.rel (%p749) target = $region82
      $region81: #{mask_estimation_forward.1} parent=5 // pred_region
        %s752 = ssub.s32 %s11, 2
        // Predicated region
        $region83: #{mask_estimation_forward.1} parent=81 // pred_check
          %p753 = pneg %p197
        $region84: #{mask_estimation_forward.1} parent=81 // pred_check_branch
          %755 = sbr.rel (%p753) target = $region86
        $region85: #{mask_estimation_forward.1} parent=81 // pred_region
          %s756 = sand.u32 %s182, 1
          %s757 = sand.u32 %s182, 1
          %s758 = smul.addr %s757, 16
          %s759 = scalar_lea.vmem [#allocation2], %s758
        $region86: #{mask_estimation_forward.1} parent=81 // pred_fallthru
          _
      $region82: #{mask_estimation_forward.1} parent=5 // pred_fallthru
        _
    $region6: #{mask_estimation_forward.1} parent=1 // loop_footer
      %s15 = sadd.s32 1, %s11
    $region7: #{mask_estimation_forward.1} parent=1 // loop_footer_branch
      %10 = sbr.rel target = $region3
    $region8: #{mask_estimation_forward.1} parent=1 // loop_exit
      _

</llo_original>
